<compile_context>
chip_gen: v6e
topology: v6e:2x2x1
jax: 0.10.0
libtpu: 0.0.40
codegen_flags: <defaults>
</compile_context>

<pallas_src>
import functools

import jax
import jax.numpy as jnp
from jax.experimental import pallas as pl
from jax.experimental.pallas import tpu as pltpu

_LANES = 128


def _round_up(x, m):
    return ((x + m - 1) // m) * m


def _sample_rank_kernel(scalars_ref,     # SMEM f32[2]          : [gold_score, gold_metric]
                        bscore_ref,      # SMEM f32[num_tiles]  : prev score of tile's first step
                        bmetric_ref,     # SMEM f32[num_tiles]  : prev metric of tile's first step
                        cur_score_ref,   # VMEM [TR,128]        : score after each Gibbs step
                        cur_metric_ref,  # VMEM [TR,128]        : metric after each step
                        tot_ref,         # VMEM f32[1,8,128]    : per-tile partial loss sum
                        cnt_ref,         # VMEM i32[1,8,128]    : per-tile partial term count
                        *,
                        tile_rows: int,
                        n_valid: int,
                        mask_tail: bool,
                        gold_loss_enabled: bool,
                        pair_loss_enabled: bool):
    cs = cur_score_ref[...].astype(jnp.float32)
    cm = cur_metric_ref[...].astype(jnp.float32)
    zero = jnp.zeros_like(cs)

    contrib = zero                              # per-element sum of loss terms (f32)
    cnt = jnp.zeros(cs.shape, jnp.int32)        # per-element number of loss terms (i32)

    need_idx = pair_loss_enabled or mask_tail
    if need_idx:
        col = jax.lax.broadcasted_iota(jnp.int32, (1, _LANES), 1)        # lane index
        row = jax.lax.broadcasted_iota(jnp.int32, (tile_rows, 1), 0)     # sublane/row index

    if gold_loss_enabled:
        gold_score = scalars_ref[0]
        gold_metric = scalars_ref[1]
        g = gold_metric - gold_score                       # scalar, hoisted
        gold_mask = cm < gold_metric
        gold_term = jnp.maximum(zero, g + (cs - cm))       # == relu((gm-cm)-(gs-cs))
        contrib = contrib + jnp.where(gold_mask, gold_term, zero)
        cnt = cnt + gold_mask.astype(jnp.int32)

    if pair_loss_enabled:
        # prev[t] = cur[t-1] in flattened step order:
        #   lane roll by 1  : lane_x[r, c] = cur[r, c-1]    (lane 0 holds cur[r, 127])
        #   sublane roll of that : row_x[r, 0] = cur[r-1, 127]
        #   element [0, 0] of the tile takes the per-tile boundary scalar
        #   (last step of the previous tile, or the random-init value).
        lane_s = pltpu.roll(cs, shift=1, axis=1)
        lane_m = pltpu.roll(cm, shift=1, axis=1)
        row_s = pltpu.roll(lane_s, shift=1, axis=0)
        row_m = pltpu.roll(lane_m, shift=1, axis=0)

        i = pl.program_id(0)
        is_lane0 = col == 0                                # (1,128)
        is_first = jnp.logical_and(is_lane0, row == 0)     # (TR,128) via broadcast
        ps = jnp.where(is_first, bscore_ref[i], jnp.where(is_lane0, row_s, lane_s))
        pm = jnp.where(is_first, bmetric_ref[i], jnp.where(is_lane0, row_m, lane_m))

        d_m = cm - pm
        d_s = cs - ps
        x = d_m - d_s
        # up (d_m>0) and dn (d_m<0) branches are sign-symmetric; equal metrics
        # emit no term (handled by pair_mask).
        pair_term = jnp.maximum(zero, jnp.where(d_m > 0, x, -x))
        pair_mask = d_m != 0
        contrib = contrib + jnp.where(pair_mask, pair_term, zero)
        cnt = cnt + pair_mask.astype(jnp.int32)

    if mask_tail:
        # Tail padding elements (beyond the real trajectory length) contribute
        # nothing.  n_valid is a static Python int baked into the kernel.
        idx = (pl.program_id(0) * tile_rows + row) * _LANES + col
        valid = idx < n_valid
        contrib = jnp.where(valid, contrib, zero)
        cnt = jnp.where(valid, cnt, 0)

    # Fold TR rows down to an (8,128) vreg-shaped partial (leading-axis sum is
    # plain VPU adds, no cross-lane XLU work); the final reduction happens in
    # the wrapper.
    tot_ref[0] = jnp.sum(contrib.reshape(tile_rows // 8, 8, _LANES), axis=0)
    cnt_ref[0] = jnp.sum(cnt.reshape(tile_rows // 8, 8, _LANES), axis=0)


def sample_rank_loss(gold_score, gold_metric, init_score, init_metric,
                     cur_score, cur_metric, *,
                     gold_loss_enabled=True, pair_loss_enabled=True,
                     max_tile_rows=2048):
    """cur_score / cur_metric: per-Gibbs-step trajectories, any shape (raveled
    to the flat step order), f32 or bf16.  Scalars: gold / random-init values."""
    cur_score = jnp.ravel(jnp.asarray(cur_score))
    cur_metric = jnp.ravel(jnp.asarray(cur_metric))
    T = cur_score.shape[0]
    assert T > 0 and cur_metric.shape[0] == T

    L = _LANES
    R_raw = pl.cdiv(T, L)
    max_tile_rows = max(8, (int(max_tile_rows) // 8) * 8)

    if R_raw <= max_tile_rows:
        TR = _round_up(R_raw, 8)
        num_tiles = 1
    else:
        TR = max_tile_rows
        num_tiles = pl.cdiv(R_raw, TR)
    R_pad = num_tiles * TR
    n_total = R_pad * L
    pad = n_total - T

    if pad:
        cur_score_p = jnp.pad(cur_score, (0, pad))
        cur_metric_p = jnp.pad(cur_metric, (0, pad))
    else:
        cur_score_p, cur_metric_p = cur_score, cur_metric
    cs2 = cur_score_p.reshape(R_pad, L)
    cm2 = cur_metric_p.reshape(R_pad, L)

    scalars = jnp.stack([jnp.asarray(gold_score, jnp.float32),
                         jnp.asarray(gold_metric, jnp.float32)])

    # Per-tile boundary = prev value of the tile's first step: random-init for
    # tile 0, cur_flat[i*TR*128 - 1] for tile i>0 (always inside the real data,
    # since only the last tile can contain padding).
    tile_elems = TR * L
    first_s = jnp.reshape(jnp.asarray(init_score, jnp.float32), (1,))
    first_m = jnp.reshape(jnp.asarray(init_metric, jnp.float32), (1,))
    if num_tiles > 1:
        b_idx = jnp.arange(1, num_tiles) * tile_elems - 1
        boundary_score = jnp.concatenate([first_s, cur_score[b_idx].astype(jnp.float32)])
        boundary_metric = jnp.concatenate([first_m, cur_metric[b_idx].astype(jnp.float32)])
    else:
        boundary_score = first_s
        boundary_metric = first_m

    kernel = functools.partial(_sample_rank_kernel,
                               tile_rows=TR,
                               n_valid=int(T),
                               mask_tail=bool(pad),
                               gold_loss_enabled=bool(gold_loss_enabled),
                               pair_loss_enabled=bool(pair_loss_enabled))

    # VMEM budget: 2 trajectory inputs x 2 (double buffer) + generous headroom
    # for f32 temporaries of the pair branch.  Stays well under v7x's 64 MiB.
    itemsize = max(cur_score.dtype.itemsize, cur_metric.dtype.itemsize)
    per_in_tile = TR * L * itemsize
    est = 4 * per_in_tile + 20 * TR * L * 4 + (4 << 20)
    vmem_limit = int(min(max(est, 16 << 20), 48 << 20))

    tot, cnt = pl.pallas_call(
        kernel,
        grid=(num_tiles,),
        in_specs=[
            pl.BlockSpec(memory_space=pltpu.MemorySpace.SMEM),   # scalars (2,)
            pl.BlockSpec(memory_space=pltpu.MemorySpace.SMEM),   # boundary_score (num_tiles,)
            pl.BlockSpec(memory_space=pltpu.MemorySpace.SMEM),   # boundary_metric (num_tiles,)
            pl.BlockSpec((TR, L), lambda i: (i, 0)),             # cur_score tile
            pl.BlockSpec((TR, L), lambda i: (i, 0)),             # cur_metric tile
        ],
        out_specs=[
            pl.BlockSpec((1, 8, L), lambda i: (i, 0, 0)),        # partial sums
            pl.BlockSpec((1, 8, L), lambda i: (i, 0, 0)),        # partial counts
        ],
        out_shape=[
            jax.ShapeDtypeStruct((num_tiles, 8, L), jnp.float32),
            jax.ShapeDtypeStruct((num_tiles, 8, L), jnp.int32),
        ],
        compiler_params=pltpu.CompilerParams(
            dimension_semantics=("parallel",),
            vmem_limit_bytes=vmem_limit),
    )(scalars, boundary_score, boundary_metric, cs2, cm2)

    total = jnp.sum(tot)
    count = jnp.sum(cnt)
    # TODO(synk): the original module divides by len(loss_terms) and would
    # raise on an empty list; we return 0.0 for the 0-term case instead.
    return jnp.where(count > 0, total / count.astype(jnp.float32), jnp.float32(0.0))


def _reference(gold_score, gold_metric, init_score, init_metric,
               cur_score, cur_metric, gold_loss_enabled, pair_loss_enabled):
    """Plain-JAX replica of the per-step loss accumulation (for checking)."""
    cs = jnp.ravel(cur_score).astype(jnp.float32)
    cm = jnp.ravel(cur_metric).astype(jnp.float32)
    ps = jnp.concatenate([jnp.reshape(jnp.asarray(init_score, jnp.float32), (1,)), cs[:-1]])
    pm = jnp.concatenate([jnp.reshape(jnp.asarray(init_metric, jnp.float32), (1,)), cm[:-1]])
    total = jnp.float32(0.0)
    count = jnp.float32(0.0)
    if gold_loss_enabled:
        m = cm < gold_metric
        t = jnp.maximum(0.0, (gold_metric - cm) - (gold_score - cs))
        total = total + jnp.sum(jnp.where(m, t, 0.0))
        count = count + jnp.sum(m).astype(jnp.float32)
    if pair_loss_enabled:
        up = cm > pm
        dn = cm < pm
        total = total + jnp.sum(jnp.where(up, jnp.maximum(0.0, (cm - pm) - (cs - ps)), 0.0))
        total = total + jnp.sum(jnp.where(dn, jnp.maximum(0.0, (pm - cm) - (ps - cs)), 0.0))
        count = count + jnp.sum(up).astype(jnp.float32) + jnp.sum(dn).astype(jnp.float32)
    return jnp.where(count > 0, total / count, jnp.float32(0.0))


if __name__ == "__main__":
    key = jax.random.PRNGKey(0)

    def make_case(T, k, dtype=jnp.float32):
        k1, k2, k3, k4, k5 = jax.random.split(k, 5)
        cur_score = jax.random.normal(k1, (T,), dtype=jnp.float32).astype(dtype)   # factor_graph.current_score per step
        cur_metric = jax.random.uniform(k2, (T,), dtype=jnp.float32).astype(dtype)  # incremental_compute_metric per step
        init_score = jax.random.normal(k3, (), dtype=jnp.float32)                   # random_init_labels()
        init_metric = jax.random.uniform(k4, (), dtype=jnp.float32)                 # metric of initial sample
        gold_score = jax.random.normal(k5, (), dtype=jnp.float32)                   # compute_score_on_labels(gt)
        gold_metric = jnp.float32(0.8)                                               # metric.compute_metric(gt)
        return gold_score, gold_metric, init_score, init_metric, cur_score, cur_metric

    def run_and_check(args, rtol=1e-4, atol=1e-4, **kw):
        out = jax.block_until_ready(sample_rank_loss(*args, **kw))
        ref = _reference(*args,
                         kw.get("gold_loss_enabled", True),
                         kw.get("pair_loss_enabled", True))
        assert jnp.allclose(out, ref, rtol=rtol, atol=atol), (out, ref, kw)
        return out

    # Case A: num_samples=2 x pool of 128 blocks -> T=256 steps; single tile
    # (rows padded 2 -> 8, in-kernel tail mask active).
    case_a = make_case(256, jax.random.fold_in(key, 0))
    run_and_check(case_a)
    run_and_check(case_a, pair_loss_enabled=False)   # gold-only path
    run_and_check(case_a, gold_loss_enabled=False)   # pair-only path

    # Case B: T=2048 steps with a forced 8-row tile -> 2 parallel grid steps,
    # exercising the cross-tile boundary scalar.
    case_b = make_case(2048, jax.random.fold_in(key, 1))
    run_and_check(case_b, max_tile_rows=8)

    # Case C: T=300 (not a multiple of 128) -> partial-lane tail masking.
    case_c = make_case(300, jax.random.fold_in(key, 2))
    run_and_check(case_c)

    # Case D: bf16 trajectories stream from HBM as-is and are upcast in-kernel.
    case_d = make_case(512, jax.random.fold_in(key, 3), dtype=jnp.bfloat16)
    run_and_check(case_d, rtol=1e-3, atol=1e-3)

    print("KERNEL_OK")
</pallas_src>

<mosaic_0001>
module attributes {stable_mosaic.version = 11 : i64} {
  func.func @_sample_rank_kernel(%arg0: i32, %arg1: memref<2xf32, #tpu.memory_space<smem>>, %arg2: memref<1xf32, #tpu.memory_space<smem>>, %arg3: memref<1xf32, #tpu.memory_space<smem>>, %arg4: memref<8x128xf32, #tpu.memory_space<vmem>>, %arg5: memref<8x128xf32, #tpu.memory_space<vmem>>, %arg6: memref<1x8x128xf32, #tpu.memory_space<vmem>>, %arg7: memref<1x8x128xi32, #tpu.memory_space<vmem>>) attributes {dimension_semantics = [#tpu.dimension_semantics<parallel>], iteration_bounds = array<i64: 1>, scalar_prefetch = 0 : i64, scratch_operands = 0 : i64, tpu.core_type = #tpu.core_type<tc>, window_params = [{transform_indices = @transform_0, window_bounds = array<i64: 2>}, {transform_indices = @transform_1, window_bounds = array<i64: 1>}, {transform_indices = @transform_2, window_bounds = array<i64: 1>}, {transform_indices = @transform_3, window_bounds = array<i64: 8, 128>}, {transform_indices = @transform_4, window_bounds = array<i64: 8, 128>}, {transform_indices = @transform_5, window_bounds = array<i64: 1, 8, 128>}, {transform_indices = @transform_6, window_bounds = array<i64: 1, 8, 128>}]} {
    %c0 = arith.constant 0 : index
    %c0_0 = arith.constant 0 : index
    %0 = vector.load %arg4[%c0, %c0_0] : memref<8x128xf32, #tpu.memory_space<vmem>>, vector<8x128xf32>
    %c0_1 = arith.constant 0 : index
    %c0_2 = arith.constant 0 : index
    %1 = vector.load %arg5[%c0_1, %c0_2] : memref<8x128xf32, #tpu.memory_space<vmem>>, vector<8x128xf32>
    %cst = arith.constant 0.000000e+00 : f32
    %2 = vector.broadcast %cst : f32 to vector<8x128xf32>
    %c0_i32 = arith.constant 0 : i32
    %3 = vector.broadcast %c0_i32 : i32 to vector<8x128xi32>
    %4 = tpu.iota {dimensions = array<i32: 1>} : vector<1x128xi32>
    %5 = tpu.iota {dimensions = array<i32: 0>} : vector<8x1xi32>
    %c0_3 = arith.constant 0 : index
    %6 = memref.load %arg1[%c0_3] : memref<2xf32, #tpu.memory_space<smem>>
    %c1 = arith.constant 1 : index
    %7 = memref.load %arg1[%c1] : memref<2xf32, #tpu.memory_space<smem>>
    %8 = arith.subf %7, %6 : f32
    %9 = vector.broadcast %7 : f32 to vector<8x128xf32>
    %10 = arith.cmpf olt, %1, %9 : vector<8x128xf32>
    %11 = arith.subf %0, %1 : vector<8x128xf32>
    %12 = vector.broadcast %8 : f32 to vector<8x128xf32>
    %13 = arith.addf %12, %11 : vector<8x128xf32>
    %14 = arith.maximumf %2, %13 : vector<8x128xf32>
    %15 = arith.select %10, %14, %2 : vector<8x128xi1>, vector<8x128xf32>
    %16 = arith.addf %2, %15 : vector<8x128xf32>
    %17 = arith.extui %10 : vector<8x128xi1> to vector<8x128xi32>
    %18 = arith.addi %3, %17 : vector<8x128xi32>
    %c1_i32 = arith.constant 1 : i32
    %19 = tpu.dynamic_rotate %0 by %c1_i32 dim 1 : vector<8x128xf32>, i32 -> vector<8x128xf32>
    %c1_i32_4 = arith.constant 1 : i32
    %20 = tpu.dynamic_rotate %1 by %c1_i32_4 dim 1 : vector<8x128xf32>, i32 -> vector<8x128xf32>
    %c1_i32_5 = arith.constant 1 : i32
    %21 = tpu.dynamic_rotate %19 by %c1_i32_5 dim 0 : vector<8x128xf32>, i32 -> vector<8x128xf32>
    %c1_i32_6 = arith.constant 1 : i32
    %22 = tpu.dynamic_rotate %20 by %c1_i32_6 dim 0 : vector<8x128xf32>, i32 -> vector<8x128xf32>
    %c0_i32_7 = arith.constant 0 : i32
    %23 = vector.broadcast %c0_i32_7 : i32 to vector<1x128xi32>
    %24 = arith.cmpi eq, %4, %23 : vector<1x128xi32>
    %c0_i32_8 = arith.constant 0 : i32
    %25 = vector.broadcast %c0_i32_8 : i32 to vector<8x1xi32>
    %26 = arith.cmpi eq, %5, %25 : vector<8x1xi32>
    %27 = vector.broadcast %24 : vector<1x128xi1> to vector<8x128xi1>
    %28 = vector.broadcast %26 : vector<8x1xi1> to vector<8x128xi1>
    %29 = arith.andi %27, %28 : vector<8x128xi1>
    %30 = arith.index_cast %arg0 : i32 to index
    %31 = memref.load %arg2[%30] : memref<1xf32, #tpu.memory_space<smem>>
    %32 = vector.shape_cast %24 : vector<1x128xi1> to vector<1x128xi1>
    %33 = vector.broadcast %32 : vector<1x128xi1> to vector<8x128xi1>
    %34 = arith.select %33, %21, %19 : vector<8x128xi1>, vector<8x128xf32>
    %35 = vector.broadcast %31 : f32 to vector<8x128xf32>
    %36 = arith.select %29, %35, %34 : vector<8x128xi1>, vector<8x128xf32>
    %37 = arith.index_cast %arg0 : i32 to index
    %38 = memref.load %arg3[%37] : memref<1xf32, #tpu.memory_space<smem>>
    %39 = vector.shape_cast %24 : vector<1x128xi1> to vector<1x128xi1>
    %40 = vector.broadcast %39 : vector<1x128xi1> to vector<8x128xi1>
    %41 = arith.select %40, %22, %20 : vector<8x128xi1>, vector<8x128xf32>
    %42 = vector.broadcast %38 : f32 to vector<8x128xf32>
    %43 = arith.select %29, %42, %41 : vector<8x128xi1>, vector<8x128xf32>
    %44 = arith.subf %1, %43 : vector<8x128xf32>
    %45 = arith.subf %0, %36 : vector<8x128xf32>
    %46 = arith.subf %44, %45 : vector<8x128xf32>
    %cst_9 = arith.constant 0.000000e+00 : f32
    %47 = vector.broadcast %cst_9 : f32 to vector<8x128xf32>
    %48 = arith.cmpf ogt, %44, %47 : vector<8x128xf32>
    %cst_10 = arith.constant 0.000000e+00 : f32
    %49 = vector.broadcast %cst_10 : f32 to vector<8x128xf32>
    %50 = arith.subf %49, %46 : vector<8x128xf32>
    %51 = arith.select %48, %46, %50 : vector<8x128xi1>, vector<8x128xf32>
    %52 = arith.maximumf %2, %51 : vector<8x128xf32>
    %cst_11 = arith.constant 0.000000e+00 : f32
    %53 = vector.broadcast %cst_11 : f32 to vector<8x128xf32>
    %54 = arith.cmpf one, %44, %53 : vector<8x128xf32>
    %55 = arith.select %54, %52, %2 : vector<8x128xi1>, vector<8x128xf32>
    %56 = arith.addf %16, %55 : vector<8x128xf32>
    %57 = arith.extui %54 : vector<8x128xi1> to vector<8x128xi32>
    %58 = arith.addi %18, %57 : vector<8x128xi32>
    %c8_i32 = arith.constant 8 : i32
    %59 = arith.muli %arg0, %c8_i32 : i32
    %60 = vector.broadcast %59 : i32 to vector<8x1xi32>
    %61 = arith.addi %60, %5 : vector<8x1xi32>
    %c128_i32 = arith.constant 128 : i32
    %62 = vector.broadcast %c128_i32 : i32 to vector<8x1xi32>
    %63 = arith.muli %61, %62 : vector<8x1xi32>
    %64 = vector.broadcast %63 : vector<8x1xi32> to vector<8x128xi32>
    %65 = vector.broadcast %4 : vector<1x128xi32> to vector<8x128xi32>
    %66 = arith.addi %64, %65 : vector<8x128xi32>
    %c256_i32 = arith.constant 256 : i32
    %67 = vector.broadcast %c256_i32 : i32 to vector<8x128xi32>
    %68 = arith.cmpi slt, %66, %67 : vector<8x128xi32>
    %69 = arith.select %68, %56, %2 : vector<8x128xi1>, vector<8x128xf32>
    %c0_i32_12 = arith.constant 0 : i32
    %70 = vector.broadcast %c0_i32_12 : i32 to vector<8x128xi32>
    %71 = arith.select %68, %58, %70 : vector<8x128xi1>, vector<8x128xi32>
    %72 = vector.shape_cast %69 : vector<8x128xf32> to vector<1x8x128xf32>
    %cst_13 = arith.constant dense<0.000000e+00> : vector<8x128xf32>
    %73 = vector.multi_reduction <add>, %72, %cst_13 [0] : vector<1x8x128xf32> to vector<8x128xf32>
    %c0_14 = arith.constant 0 : index
    %c0_15 = arith.constant 0 : index
    %c0_16 = arith.constant 0 : index
    %74 = vector.load %arg6[%c0_14, %c0_15, %c0_16] : memref<1x8x128xf32, #tpu.memory_space<vmem>>, vector<1x8x128xf32>
    %75 = vector.shape_cast %74 : vector<1x8x128xf32> to vector<8x128xf32>
    %76 = vector.shape_cast %73 : vector<8x128xf32> to vector<1x8x128xf32>
    tpu.vector_store %arg6[%c0_14, %c0_15, %c0_16], %76 {strides = array<i32>} : memref<1x8x128xf32, #tpu.memory_space<vmem>>, vector<1x8x128xf32>,
    %77 = vector.shape_cast %71 : vector<8x128xi32> to vector<1x8x128xi32>
    %cst_17 = arith.constant dense<0> : vector<8x128xi32>
    %78 = vector.multi_reduction <add>, %77, %cst_17 [0] : vector<1x8x128xi32> to vector<8x128xi32>
    %c0_18 = arith.constant 0 : index
    %c0_19 = arith.constant 0 : index
    %c0_20 = arith.constant 0 : index
    %79 = vector.load %arg7[%c0_18, %c0_19, %c0_20] : memref<1x8x128xi32, #tpu.memory_space<vmem>>, vector<1x8x128xi32>
    %80 = vector.shape_cast %79 : vector<1x8x128xi32> to vector<8x128xi32>
    %81 = vector.shape_cast %78 : vector<8x128xi32> to vector<1x8x128xi32>
    tpu.vector_store %arg7[%c0_18, %c0_19, %c0_20], %81 {strides = array<i32>} : memref<1x8x128xi32, #tpu.memory_space<vmem>>, vector<1x8x128xi32>,
    return
  }
  func.func @transform_0(%arg0: i32) -> i32 {
    %c0_i32 = arith.constant 0 : i32
    %c0_i32_0 = arith.constant 0 : i32
    return %c0_i32 : i32
  }
  func.func @transform_1(%arg0: i32) -> i32 {
    %c0_i32 = arith.constant 0 : i32
    %c0_i32_0 = arith.constant 0 : i32
    return %c0_i32 : i32
  }
  func.func @transform_2(%arg0: i32) -> i32 {
    %c0_i32 = arith.constant 0 : i32
    %c0_i32_0 = arith.constant 0 : i32
    return %c0_i32 : i32
  }
  func.func @transform_3(%arg0: i32) -> (i32, i32) {
    %c0_i32 = arith.constant 0 : i32
    %c0_i32_0 = arith.constant 0 : i32
    return %arg0, %c0_i32 : i32, i32
  }
  func.func @transform_4(%arg0: i32) -> (i32, i32) {
    %c0_i32 = arith.constant 0 : i32
    %c0_i32_0 = arith.constant 0 : i32
    return %arg0, %c0_i32 : i32, i32
  }
  func.func @transform_5(%arg0: i32) -> (i32, i32, i32) {
    %c0_i32 = arith.constant 0 : i32
    %c0_i32_0 = arith.constant 0 : i32
    %c0_i32_1 = arith.constant 0 : i32
    return %arg0, %c0_i32, %c0_i32_0 : i32, i32, i32
  }
  func.func @transform_6(%arg0: i32) -> (i32, i32, i32) {
    %c0_i32 = arith.constant 0 : i32
    %c0_i32_0 = arith.constant 0 : i32
    %c0_i32_1 = arith.constant 0 : i32
    return %arg0, %c0_i32, %c0_i32_0 : i32, i32, i32
  }
}

</mosaic_0001>

<llo_original>
// kernel: tpu_custom_call.1
$region0: #{tpu_custom_call.1}
  #allocation0 [shape = 'u32[]', space=smem, size = 0x4, offset = 0x4, fixed_abs, tag = 'smem constant byte address 0x4 - core index']
  #allocation1 [shape = 'u32[144,128]{1,0:T(1,128)}', space=vmem, size = 0x12000, scoped, tag = 'internal scratch']
  #allocation2 [shape = 'f32[1]{0:T(128)S(6)}', space=smem, size = 0x200, scoped, tag = 'scoped memory for tpu_custom_call.1']
  #allocation3 [shape = 'f32[1]{0:T(128)S(6)}', space=smem, size = 0x200, scoped, tag = 'scoped memory for tpu_custom_call.1']
  %s0 = inlined_call_operand.vmem [shape: f32[2], index: 0, kind: input, shape index: {}]
  %s1 = inlined_call_operand.<no memory space> [shape: f32[1], index: 1, kind: input, shape index: {}]
  %s2 = inlined_call_operand.<no memory space> [shape: f32[1], index: 2, kind: input, shape index: {}]
  %s3 = inlined_call_operand.hbm [shape: f32[8,128], index: 3, kind: input, shape index: {}]
  %s4 = inlined_call_operand.hbm [shape: f32[8,128], index: 4, kind: input, shape index: {}]
  %s5 = inlined_call_operand.hbm [shape: f32[1,8,128], index: 5, kind: output, shape index: {0}]
  %s6 = inlined_call_operand.hbm [shape: s32[1,8,128], index: 6, kind: output, shape index: {1}]
  %7 = xla_tuple %s5, %s6
  %s8 = sld [smem:[#allocation0]]
  $region50: #{tpu_custom_call.1} parent=0
    _
  %s10 = ssub.s32 1, %s8
  %s11 = scalar_select 0, %s10, %s8
  %12 = sst [smem:[#allocation2]] %s1
  %13 = sst [smem:[#allocation3]] %s2
  $region1: #{tpu_custom_call.1} parent=0
    #allocation4 [shape = 'u8[512]{0}', space=smem, size = 0x200, scoped, tag = 'input window, operand 0, single buffered']
    #allocation5 [shape = 's32[1]{0}', space=sflag, size = 0x4, scoped, tag = 'scoped memory for tpu_custom_call.1']
    #allocation6 [shape = 's32[1]{0}', space=sflag, size = 0x4, scoped, tag = 'scoped memory for tpu_custom_call.1']
    #allocation7 [shape = 's32[1]{0}', space=sflag, size = 0x4, scoped, tag = 'scoped memory for tpu_custom_call.1']
    #allocation8 [shape = 'u8[4096]{0}', space=vmem, size = 0x1000, scoped, tag = 'input window, operand 3, single buffered']
    #allocation9 [shape = 'u8[4096]{0}', space=vmem, size = 0x1000, scoped, tag = 'input window, operand 4, single buffered']
    #allocation10 [shape = 's32[1]{0}', space=sflag, size = 0x4, scoped, tag = 'scoped memory for tpu_custom_call.1']
    #allocation11 [shape = 'u8[4096]{0}', space=vmem, size = 0x1000, scoped, tag = 'output window, operand 0, single buffered']
    #allocation12 [shape = 'u8[4096]{0}', space=vmem, size = 0x1000, scoped, tag = 'output window, operand 1, single buffered']
    #allocation13 [shape = 's32[1]{0}', space=sflag, size = 0x4, scoped, tag = 'scoped memory for tpu_custom_call.1']
    %14 = vsyncpa [#allocation7], 0
    %15 = vsyncpa [#allocation5], 0
    %16 = vsyncpa [#allocation10], 0
    %17 = vsyncpa [#allocation6], 0
    %18 = vsyncpa [#allocation13], 0
    // Predicated region
    $region2: #{tpu_custom_call.1} parent=1 // pred_check
      _
    $region3: #{tpu_custom_call.1} parent=1 // pred_check_branch
      %20 = sbr.rel (0) target = $region5
    $region4: #{tpu_custom_call.1} parent=1 // pred_region
      %s22 = ssub.s32 16, 16
      %23 = vsyncadd [#allocation7], %s22
      %s25 = sshll.u32 %s0, 4
      %s26 = int_to_ptr.vmem [resolvable:$true] %s25
      %28 = dma.vmem_to_smem %s26, 16, [#allocation4], [#allocation7]
    $region5: #{tpu_custom_call.1} parent=1 // pred_fallthru
      _
    // Predicated region
    $region6: #{tpu_custom_call.1} parent=1 // pred_check
      _
    $region7: #{tpu_custom_call.1} parent=1 // pred_check_branch
      %30 = sbr.rel (0) target = $region9
    $region8: #{tpu_custom_call.1} parent=1 // pred_region
      _
    $region9: #{tpu_custom_call.1} parent=1 // pred_fallthru
      _
    // Predicated region
    $region10: #{tpu_custom_call.1} parent=1 // pred_check
      _
    $region11: #{tpu_custom_call.1} parent=1 // pred_check_branch
      %32 = sbr.rel (0) target = $region13
    $region12: #{tpu_custom_call.1} parent=1 // pred_region
      _
    $region13: #{tpu_custom_call.1} parent=1 // pred_fallthru
      _
    // Predicated region
    $region14: #{tpu_custom_call.1} parent=1 // pred_check
      _
    $region15: #{tpu_custom_call.1} parent=1 // pred_check_branch
      %34 = sbr.rel (0) target = $region17
    $region16: #{tpu_custom_call.1} parent=1 // pred_region
      %s36 = ssub.s32 128, 128
      %37 = vsyncadd [#allocation5], %s36
      %s39 = sshll.u32 [#allocation8], 4
      %s40 = int_to_ptr.vmem [resolvable:$true] %s39
      %42 = dma.hbm_to_vmem [thread:$0]  %s3, 128, %s40, [#allocation5]
    $region17: #{tpu_custom_call.1} parent=1 // pred_fallthru
      _
    // Predicated region
    $region18: #{tpu_custom_call.1} parent=1 // pred_check
      _
    $region19: #{tpu_custom_call.1} parent=1 // pred_check_branch
      %44 = sbr.rel (0) target = $region21
    $region20: #{tpu_custom_call.1} parent=1 // pred_region
      %s46 = ssub.s32 128, 128
      %47 = vsyncadd [#allocation10], %s46
      %s49 = sshll.u32 [#allocation9], 4
      %s50 = int_to_ptr.vmem [resolvable:$true] %s49
      %52 = dma.hbm_to_vmem [thread:$0]  %s4, 128, %s50, [#allocation10]
    $region21: #{tpu_custom_call.1} parent=1 // pred_fallthru
      _
    // Predicated region
    $region22: #{tpu_custom_call.1} parent=1 // pred_check
      _
    $region23: #{tpu_custom_call.1} parent=1 // pred_check_branch
      %54 = sbr.rel (0) target = $region25
    $region24: #{tpu_custom_call.1} parent=1 // pred_region
      %55 = dma.done [#allocation7], 16
    $region25: #{tpu_custom_call.1} parent=1 // pred_fallthru
      _
    // Predicated region
    $region26: #{tpu_custom_call.1} parent=1 // pred_check
      _
    $region27: #{tpu_custom_call.1} parent=1 // pred_check_branch
      %57 = sbr.rel (0) target = $region29
    $region28: #{tpu_custom_call.1} parent=1 // pred_region
      %58 = dma.done [#allocation5], 128
    $region29: #{tpu_custom_call.1} parent=1 // pred_fallthru
      _
    // Predicated region
    $region30: #{tpu_custom_call.1} parent=1 // pred_check
      _
    $region31: #{tpu_custom_call.1} parent=1 // pred_check_branch
      %60 = sbr.rel (0) target = $region33
    $region32: #{tpu_custom_call.1} parent=1 // pred_region
      %61 = dma.done [#allocation10], 128
    $region33: #{tpu_custom_call.1} parent=1 // pred_fallthru
      _
    %62 = sfence
    %v63 = vld [vmem:[#allocation8] sm:$0xff]
    %v64 = vld [vmem:[#allocation9] sm:$0xff]
    %v65 = vlaneseq
    %v66 = vand.u32 %v65, 127
    %v67 = vlaneseq
    %v68 = vshrl.u32 %v67, 7
    %s69 = sld [smem:[#allocation4]]
    %s70 = sld [smem:[#allocation4 + $0x1]]
    %s71 = ssub.f32 %s70, %s69
    %v72 = vstv %s70
    %vm73 = vcmp.lt.f32.partialorder %v64, %v72
    %v74 = vsub.f32 %v63, %v64
    %v75 = vstv %s71
    %v76 = vadd.f32 %v75, %v74
    %v77 = vmax.f32 %v76, 0.0
    %v78 = vsel %vm73, %v77, 0.0
    %v79 = vadd.f32 %v78, 0.0
    %v80 = vsel %vm73, 1, 0
    %81 = vrot.lane.b32.xlu0 %v63, 1
    %v82 = vpop.permute.xlu0 %81
    %83 = vrot.lane.b32.xlu0 %v64, 1
    %v84 = vpop.permute.xlu0 %83
    %v85 = vrot.slane %v82, 7
    %v86 = vrot.slane %v84, 7
    %vm87 = vcmp.eq.s32.totalorder %v66, 0
    %vm88 = vcmp.eq.s32.totalorder %v68, 0
    %v89 = vsel %vm87, 1, 0
    %vm90 = vcmp.eq.s32.totalorder %v89, 1
    %v91 = vsel %vm88, 1, 0
    %vm92 = vcmp.eq.s32.totalorder %v91, 1
    %vm93 = vmand %vm90, %vm92
    %s94 = sld [smem:[#allocation2]]
    %v95 = vsel %vm90, %v85, %v82
    %v96 = vstv %s94
    %v97 = vsel %vm93, %v96, %v95
    %s98 = sld [smem:[#allocation3]]
    %v99 = vsel %vm90, %v86, %v84
    %v100 = vstv %s98
    %v101 = vsel %vm93, %v100, %v99
    %v102 = vsub.f32 %v64, %v101
    %v103 = vsub.f32 %v63, %v97
    %v104 = vsub.f32 %v102, %v103
    %vm105 = vcmp.gt.f32.partialorder %v102, 0.0
    %v106 = vsub.f32 0.0, %v104
    %v107 = vsel %vm105, %v104, %v106
    %v108 = vmax.f32 %v107, 0.0
    %vm109 = vcmp.ne.f32.partialorder %v102, 0.0
    %v110 = vsel %vm109, %v108, 0.0
    %v111 = vadd.f32 %v79, %v110
    %v112 = vsel %vm109, 1, 0
    %v113 = vadd.s32 %v80, %v112
    %s114 = smul.u32 0, 8
    %v115 = vstv %s114
    %v116 = vadd.s32 %v115, %v68
    %v117 = vmul.u32 %v116, 128
    %v118 = vadd.s32 %v117, %v66
    %vm119 = vcmp.lt.s32.totalorder %v118, 256
    %v120 = vsel %vm119, %v111, 0.0
    %v121 = vsel %vm119, %v113, 0
    %v122 = vadd.f32 %v120, 0.0
    %123 = vst [vmem:[#allocation11] sm:$0xff] %v122
    %124 = vst [vmem:[#allocation12] sm:$0xff] %v121
    // Predicated region
    $region34: #{tpu_custom_call.1} parent=1 // pred_check
      _
    $region35: #{tpu_custom_call.1} parent=1 // pred_check_branch
      %126 = sbr.rel (0) target = $region37
    $region36: #{tpu_custom_call.1} parent=1 // pred_region
      %s128 = ssub.s32 128, 128
      %129 = vsyncadd [#allocation6], %s128
      %s131 = sshll.u32 [#allocation11], 4
      %s132 = int_to_ptr.vmem [resolvable:$true] %s131
      %134 = dma.vmem_to_hbm [thread:$0]  %s132, 128, %s5, [#allocation6]
    $region37: #{tpu_custom_call.1} parent=1 // pred_fallthru
      _
    // Predicated region
    $region38: #{tpu_custom_call.1} parent=1 // pred_check
      _
    $region39: #{tpu_custom_call.1} parent=1 // pred_check_branch
      %136 = sbr.rel (0) target = $region41
    $region40: #{tpu_custom_call.1} parent=1 // pred_region
      %s138 = ssub.s32 128, 128
      %139 = vsyncadd [#allocation13], %s138
      %s141 = sshll.u32 [#allocation12], 4
      %s142 = int_to_ptr.vmem [resolvable:$true] %s141
      %144 = dma.vmem_to_hbm [thread:$0]  %s142, 128, %s6, [#allocation13]
    $region41: #{tpu_custom_call.1} parent=1 // pred_fallthru
      _
    // Predicated region
    $region42: #{tpu_custom_call.1} parent=1 // pred_check
      _
    $region43: #{tpu_custom_call.1} parent=1 // pred_check_branch
      %146 = sbr.rel (0) target = $region45
    $region44: #{tpu_custom_call.1} parent=1 // pred_region
      %147 = dma.done [#allocation6], 128
    $region45: #{tpu_custom_call.1} parent=1 // pred_fallthru
      _
    // Predicated region
    $region46: #{tpu_custom_call.1} parent=1 // pred_check
      _
    $region47: #{tpu_custom_call.1} parent=1 // pred_check_branch
      %149 = sbr.rel (0) target = $region49
    $region48: #{tpu_custom_call.1} parent=1 // pred_region
      %150 = dma.done [#allocation13], 128
    $region49: #{tpu_custom_call.1} parent=1 // pred_fallthru
      _
    %151 = vsyncpa [#allocation5], 1
    %152 = vsyncpa [#allocation10], 1
    %153 = vsyncpa [#allocation6], 1
    %154 = vsyncpa [#allocation13], 1
    %155 = vsyncpa [#allocation7], 1

</llo_original>
